<compile_context>
chip_gen: v6e
topology: v6e:2x2x1
jax: 0.10.0
libtpu: 0.0.40
codegen_flags: <defaults>
</compile_context>

<pallas_src>
import jax
import jax.numpy as jnp
from jax.experimental import pallas as pl
from jax.experimental.pallas import tpu as pltpu


def basic_conv2d_bn(x, weight, gamma, beta, running_mean, running_var, *,
                    stride=1, padding=0, dilation=1, eps=1e-5,
                    compute_dtype=jnp.float32, num_parallel_steps=None):
    """Forward of BasicConv2d: BatchNorm2d(Conv2d(x, bias=False)), NCHW in/out.

    x      : (N, Cin, H, W)        float32
    weight : (Cout, Cin, K, K)     PyTorch Conv2d weight layout
    gamma, beta, running_mean, running_var : (Cout,)   BatchNorm2d parameters
    compute_dtype : dtype for the MXU matmul inputs (f32, or bf16 on v6e/v7x).
    """
    assert stride == 1, "only stride=1 is implemented"
    N, Cin, H, W = x.shape
    Cout, Cin_w, KH, KW = weight.shape
    assert Cin_w == Cin and KH == KW
    K = KH

    H_out = H + 2 * padding - dilation * (K - 1)
    W_out = W + 2 * padding - dilation * (K - 1)
    assert H_out > 0 and W_out > 0
    H_pad = H + 2 * padding
    W_pad = W + 2 * padding

    # One "parallel" grid axis, 2-wide when possible (one per v7x TensorCore);
    # the remaining NB images per step are folded into the matmul lane axis.
    if num_parallel_steps is None:
        G = 2 if (N % 2 == 0 and N >= 2) else 1
    else:
        G = num_parallel_steps
    assert N % G == 0
    NB = N // G

    # Spatial zero-pad + exactly enough extra zero rows so every tap's flat slice
    # off : off + L_out stays in bounds.  The flattening reshape is contiguous (free).
    halo = dilation * (K - 1)
    extra_rows = -(-halo // W_pad) if halo else 0          # ceil(halo / W_pad)
    x_pad = jnp.pad(x, ((0, 0), (0, 0),
                        (padding, padding + extra_rows),
                        (padding, padding)))
    L_in = (H_pad + extra_rows) * W_pad
    x_flat = x_pad.reshape(N, Cin, L_in).astype(compute_dtype)

    # Lane-dense flat output keeps the *padded* row width W_pad; the trailing `halo`
    # lanes of each row are junk, sliced off after the kernel (only when halo > 0).
    L_out = H_out * W_pad
    L_tot = NB * L_out

    KKC = K * K * Cin
    KKC_pad = -(-KKC // 8) * 8                              # contraction dim -> sublane multiple

    tap_offsets = tuple(kh * dilation * W_pad + kw * dilation
                        for kh in range(K) for kw in range(K))
    assert max(tap_offsets) + L_out <= L_in

    # Inference BatchNorm folded into the conv:  y = (scale * W) (*) x + shift
    f32 = jnp.float32
    inv_std = 1.0 / jnp.sqrt(running_var.astype(f32) + eps)
    scale = gamma.astype(f32) * inv_std                                   # (Cout,)
    shift = (beta.astype(f32) - running_mean.astype(f32) * scale).reshape(Cout, 1)

    # (Cout, Cin, K, K) -> (Cout, K, K, Cin) -> (Cout, K*K*Cin), column t*Cin+ci for tap t.
    w2d = jnp.transpose(weight.astype(f32), (0, 2, 3, 1)).reshape(Cout, KKC)
    w2d = w2d * scale[:, None]
    w2d = jnp.pad(w2d, ((0, 0), (0, KKC_pad - KKC))).astype(compute_dtype)

    # Generation-aware VMEM budget (all pipelined blocks counted double-buffered).
    isz_c = jnp.dtype(compute_dtype).itemsize
    isz_o = jnp.dtype(x.dtype).itemsize
    vmem_needed = (2 * NB * Cin * L_in * isz_c          # x block
                   + 2 * NB * Cout * L_out * isz_o      # out block
                   + 2 * Cout * KKC_pad * isz_c         # resident weights
                   + 2 * Cout * 4                       # resident shift
                   + KKC_pad * L_tot * isz_c)           # shifted-window slab scratch
    try:
        vmem_cap = int(pltpu.get_tpu_info().vmem_capacity_bytes)
    except Exception:
        vmem_cap = 64 * 1024 * 1024                     # v7x per-TensorCore physical VMEM
    assert vmem_needed + (2 << 20) < vmem_cap, (
        "image too large for whole-image-per-step tiling", vmem_needed, vmem_cap)
    vmem_limit = int(min(vmem_cap - (1 << 20), max(vmem_needed + (2 << 20), 16 << 20)))

    def kernel(x_ref, w_ref, shift_ref, o_ref, slab_ref):
        xv = x_ref[...]                                 # (NB, Cin, L_in), compute_dtype
        # Build the stacked shifted-window slab once: rows [t*Cin:(t+1)*Cin] hold tap t.
        # Each tap is a single contiguous lane slice, done once and reused by one dot.
        for b in range(NB):
            for t, off in enumerate(tap_offsets):
                slab_ref[t * Cin:(t + 1) * Cin, b * L_out:(b + 1) * L_out] = (
                    xv[b, :, off:off + L_out])
        if KKC_pad > KKC:
            # Weight columns here are zero; zero the rows anyway to avoid stale NaN*0.
            slab_ref[KKC:, :] = jnp.zeros((KKC_pad - KKC, L_tot), compute_dtype)
        # One fat MXU matmul: contraction = K*K*Cin (padded), lanes = NB*L_out.
        y = jnp.dot(w_ref[...], slab_ref[...],
                    preferred_element_type=jnp.float32) + shift_ref[...]
        for b in range(NB):
            o_ref[b] = y[:, b * L_out:(b + 1) * L_out].astype(o_ref.dtype)

    out_flat = pl.pallas_call(
        kernel,
        out_shape=jax.ShapeDtypeStruct((N, Cout, L_out), x.dtype),
        grid_spec=pltpu.PrefetchScalarGridSpec(
            num_scalar_prefetch=0,
            grid=(G,),
            in_specs=[
                pl.BlockSpec((NB, Cin, L_in), lambda n: (n, 0, 0)),
                pl.BlockSpec((Cout, KKC_pad), lambda n: (0, 0)),   # resident across steps
                pl.BlockSpec((Cout, 1), lambda n: (0, 0)),         # resident across steps
            ],
            out_specs=pl.BlockSpec((NB, Cout, L_out), lambda n: (n, 0, 0)),
            scratch_shapes=[pltpu.VMEM((KKC_pad, L_tot), compute_dtype)],
        ),
        compiler_params=pltpu.CompilerParams(
            dimension_semantics=("parallel",),
            vmem_limit_bytes=vmem_limit),
    )(x_flat, w2d, shift)

    out = out_flat.reshape(N, Cout, H_out, W_pad)
    if W_out != W_pad:
        out = out[:, :, :, :W_out]
    return out


def _reference(x, weight, gamma, beta, running_mean, running_var, *,
               stride=1, padding=0, dilation=1, eps=1e-5):
    y = jax.lax.conv_general_dilated(
        x.astype(jnp.float32), weight.astype(jnp.float32),
        window_strides=(stride, stride),
        padding=[(padding, padding), (padding, padding)],
        rhs_dilation=(dilation, dilation),
        dimension_numbers=("NCHW", "OIHW", "NCHW"),
        precision=jax.lax.Precision.HIGHEST)
    scale = gamma / jnp.sqrt(running_var + eps)
    shift = beta - running_mean * scale
    return y * scale[None, :, None, None] + shift[None, :, None, None]


def _make_params(key, cin, cout, k):
    kw_, kg, kb, km, kv = jax.random.split(key, 5)
    bound = 1.0 / (cin * k * k) ** 0.5
    weight = jax.random.uniform(kw_, (cout, cin, k, k), minval=-bound, maxval=bound,
                                dtype=jnp.float32)
    gamma = jax.random.uniform(kg, (cout,), minval=0.5, maxval=1.5, dtype=jnp.float32)
    beta = jax.random.normal(kb, (cout,), dtype=jnp.float32) * 0.1
    running_mean = jax.random.normal(km, (cout,), dtype=jnp.float32) * 0.1
    running_var = jax.random.uniform(kv, (cout,), minval=0.5, maxval=1.5, dtype=jnp.float32)
    return weight, gamma, beta, running_mean, running_var


if __name__ == "__main__":
    key = jax.random.PRNGKey(0)
    kx, k1, k2, k3 = jax.random.split(key, 4)

    # BasicConv2d configs applied to a (2, 4, 16, 16) input.
    x = jax.random.normal(kx, (2, 4, 16, 16), dtype=jnp.float32)

    configs = [
        dict(cout=8, k=3, padding=1, dilation=1),   # BasicConv2d(4, 8, 3, padding=1)
        dict(cout=8, k=3, padding=2, dilation=2),   # dilated 3x3
        dict(cout=4, k=1, padding=0, dilation=1),   # 1x1 channel mix
    ]
    for cfg, kp in zip(configs, (k1, k2, k3)):
        weight, gamma, beta, mean, var = _make_params(kp, 4, cfg["cout"], cfg["k"])
        ref = _reference(x, weight, gamma, beta, mean, var,
                         stride=1, padding=cfg["padding"], dilation=cfg["dilation"])
        out = basic_conv2d_bn(x, weight, gamma, beta, mean, var,
                              stride=1, padding=cfg["padding"], dilation=cfg["dilation"])
        out = jax.block_until_ready(out)
        assert out.shape == ref.shape, (out.shape, ref.shape)
        assert jnp.allclose(out, ref, atol=5e-3, rtol=5e-3), (
            cfg, float(jnp.max(jnp.abs(out - ref))))

    # bf16 MXU input path (v6e/v7x optimisation): f32 accumulation, looser tolerance.
    weight, gamma, beta, mean, var = _make_params(k1, 4, 8, 3)
    ref = _reference(x, weight, gamma, beta, mean, var, stride=1, padding=1, dilation=1)
    out = basic_conv2d_bn(x, weight, gamma, beta, mean, var, stride=1, padding=1,
                          dilation=1, compute_dtype=jnp.bfloat16)
    out = jax.block_until_ready(out)
    assert out.shape == ref.shape
    assert jnp.allclose(out, ref, atol=3e-2, rtol=3e-2), float(jnp.max(jnp.abs(out - ref)))

    print("KERNEL_OK")
</pallas_src>

<mosaic_0001>
module attributes {stable_mosaic.version = 11 : i64} {
  func.func @kernel(%arg0: i32, %arg1: memref<1x4x342xf32, #tpu.memory_space<vmem>>, %arg2: memref<8x40xf32, #tpu.memory_space<vmem>>, %arg3: memref<8x1xf32, #tpu.memory_space<vmem>>, %arg4: memref<1x8x288xf32, #tpu.memory_space<vmem>>, %arg5: memref<40x288xf32, #tpu.memory_space<vmem>>) attributes {dimension_semantics = [#tpu.dimension_semantics<parallel>], iteration_bounds = array<i64: 2>, scalar_prefetch = 0 : i64, scratch_operands = 1 : i64, tpu.core_type = #tpu.core_type<tc>, window_params = [{transform_indices = @transform_0, window_bounds = array<i64: 1, 4, 342>}, {pipeline_mode = #tpu.pipeline_mode<synchronous>, transform_indices = @transform_1, window_bounds = array<i64: 8, 40>}, {pipeline_mode = #tpu.pipeline_mode<synchronous>, transform_indices = @transform_2, window_bounds = array<i64: 8, 1>}, {transform_indices = @transform_3, window_bounds = array<i64: 1, 8, 288>}]} {
    %c0 = arith.constant 0 : index
    %c0_0 = arith.constant 0 : index
    %c0_1 = arith.constant 0 : index
    %0 = vector.load %arg1[%c0, %c0_0, %c0_1] : memref<1x4x342xf32, #tpu.memory_space<vmem>>, vector<1x4x342xf32>
    %1 = vector.extract_strided_slice %0 {offsets = [0, 0, 0], sizes = [1, 4, 288], strides = [1, 1, 1]} : vector<1x4x342xf32> to vector<1x4x288xf32>
    %2 = vector.shape_cast %1 : vector<1x4x288xf32> to vector<4x288xf32>
    %c0_2 = arith.constant 0 : index
    %c0_3 = arith.constant 0 : index
    %3 = vector.load %arg5[%c0_2, %c0_3] : memref<40x288xf32, #tpu.memory_space<vmem>>, vector<4x288xf32>
    tpu.vector_store %arg5[%c0_2, %c0_3], %2 {strides = array<i32>} : memref<40x288xf32, #tpu.memory_space<vmem>>, vector<4x288xf32>,
    %4 = vector.extract_strided_slice %0 {offsets = [0, 0, 1], sizes = [1, 4, 288], strides = [1, 1, 1]} : vector<1x4x342xf32> to vector<1x4x288xf32>
    %5 = vector.shape_cast %4 : vector<1x4x288xf32> to vector<4x288xf32>
    %c4 = arith.constant 4 : index
    %c0_4 = arith.constant 0 : index
    %6 = vector.load %arg5[%c4, %c0_4] : memref<40x288xf32, #tpu.memory_space<vmem>>, vector<4x288xf32>
    tpu.vector_store %arg5[%c4, %c0_4], %5 {strides = array<i32>} : memref<40x288xf32, #tpu.memory_space<vmem>>, vector<4x288xf32>,
    %7 = vector.extract_strided_slice %0 {offsets = [0, 0, 2], sizes = [1, 4, 288], strides = [1, 1, 1]} : vector<1x4x342xf32> to vector<1x4x288xf32>
    %8 = vector.shape_cast %7 : vector<1x4x288xf32> to vector<4x288xf32>
    %c8 = arith.constant 8 : index
    %c0_5 = arith.constant 0 : index
    %9 = vector.load %arg5[%c8, %c0_5] : memref<40x288xf32, #tpu.memory_space<vmem>>, vector<4x288xf32>
    tpu.vector_store %arg5[%c8, %c0_5], %8 {strides = array<i32>} : memref<40x288xf32, #tpu.memory_space<vmem>>, vector<4x288xf32>,
    %10 = vector.extract_strided_slice %0 {offsets = [0, 0, 18], sizes = [1, 4, 288], strides = [1, 1, 1]} : vector<1x4x342xf32> to vector<1x4x288xf32>
    %11 = vector.shape_cast %10 : vector<1x4x288xf32> to vector<4x288xf32>
    %c12 = arith.constant 12 : index
    %c0_6 = arith.constant 0 : index
    %12 = vector.load %arg5[%c12, %c0_6] : memref<40x288xf32, #tpu.memory_space<vmem>>, vector<4x288xf32>
    tpu.vector_store %arg5[%c12, %c0_6], %11 {strides = array<i32>} : memref<40x288xf32, #tpu.memory_space<vmem>>, vector<4x288xf32>,
    %13 = vector.extract_strided_slice %0 {offsets = [0, 0, 19], sizes = [1, 4, 288], strides = [1, 1, 1]} : vector<1x4x342xf32> to vector<1x4x288xf32>
    %14 = vector.shape_cast %13 : vector<1x4x288xf32> to vector<4x288xf32>
    %c16 = arith.constant 16 : index
    %c0_7 = arith.constant 0 : index
    %15 = vector.load %arg5[%c16, %c0_7] : memref<40x288xf32, #tpu.memory_space<vmem>>, vector<4x288xf32>
    tpu.vector_store %arg5[%c16, %c0_7], %14 {strides = array<i32>} : memref<40x288xf32, #tpu.memory_space<vmem>>, vector<4x288xf32>,
    %16 = vector.extract_strided_slice %0 {offsets = [0, 0, 20], sizes = [1, 4, 288], strides = [1, 1, 1]} : vector<1x4x342xf32> to vector<1x4x288xf32>
    %17 = vector.shape_cast %16 : vector<1x4x288xf32> to vector<4x288xf32>
    %c20 = arith.constant 20 : index
    %c0_8 = arith.constant 0 : index
    %18 = vector.load %arg5[%c20, %c0_8] : memref<40x288xf32, #tpu.memory_space<vmem>>, vector<4x288xf32>
    tpu.vector_store %arg5[%c20, %c0_8], %17 {strides = array<i32>} : memref<40x288xf32, #tpu.memory_space<vmem>>, vector<4x288xf32>,
    %19 = vector.extract_strided_slice %0 {offsets = [0, 0, 36], sizes = [1, 4, 288], strides = [1, 1, 1]} : vector<1x4x342xf32> to vector<1x4x288xf32>
    %20 = vector.shape_cast %19 : vector<1x4x288xf32> to vector<4x288xf32>
    %c24 = arith.constant 24 : index
    %c0_9 = arith.constant 0 : index
    %21 = vector.load %arg5[%c24, %c0_9] : memref<40x288xf32, #tpu.memory_space<vmem>>, vector<4x288xf32>
    tpu.vector_store %arg5[%c24, %c0_9], %20 {strides = array<i32>} : memref<40x288xf32, #tpu.memory_space<vmem>>, vector<4x288xf32>,
    %22 = vector.extract_strided_slice %0 {offsets = [0, 0, 37], sizes = [1, 4, 288], strides = [1, 1, 1]} : vector<1x4x342xf32> to vector<1x4x288xf32>
    %23 = vector.shape_cast %22 : vector<1x4x288xf32> to vector<4x288xf32>
    %c28 = arith.constant 28 : index
    %c0_10 = arith.constant 0 : index
    %24 = vector.load %arg5[%c28, %c0_10] : memref<40x288xf32, #tpu.memory_space<vmem>>, vector<4x288xf32>
    tpu.vector_store %arg5[%c28, %c0_10], %23 {strides = array<i32>} : memref<40x288xf32, #tpu.memory_space<vmem>>, vector<4x288xf32>,
    %25 = vector.extract_strided_slice %0 {offsets = [0, 0, 38], sizes = [1, 4, 288], strides = [1, 1, 1]} : vector<1x4x342xf32> to vector<1x4x288xf32>
    %26 = vector.shape_cast %25 : vector<1x4x288xf32> to vector<4x288xf32>
    %c32 = arith.constant 32 : index
    %c0_11 = arith.constant 0 : index
    %27 = vector.load %arg5[%c32, %c0_11] : memref<40x288xf32, #tpu.memory_space<vmem>>, vector<4x288xf32>
    tpu.vector_store %arg5[%c32, %c0_11], %26 {strides = array<i32>} : memref<40x288xf32, #tpu.memory_space<vmem>>, vector<4x288xf32>,
    %cst = arith.constant 0.000000e+00 : f32
    %28 = vector.broadcast %cst : f32 to vector<4x288xf32>
    %c36 = arith.constant 36 : index
    %c0_12 = arith.constant 0 : index
    %29 = vector.load %arg5[%c36, %c0_12] : memref<40x288xf32, #tpu.memory_space<vmem>>, vector<4x288xf32>
    tpu.vector_store %arg5[%c36, %c0_12], %28 {strides = array<i32>} : memref<40x288xf32, #tpu.memory_space<vmem>>, vector<4x288xf32>,
    %c0_13 = arith.constant 0 : index
    %c0_14 = arith.constant 0 : index
    %30 = vector.load %arg2[%c0_13, %c0_14] : memref<8x40xf32, #tpu.memory_space<vmem>>, vector<8x40xf32>
    %c0_15 = arith.constant 0 : index
    %c0_16 = arith.constant 0 : index
    %31 = vector.load %arg5[%c0_15, %c0_16] : memref<40x288xf32, #tpu.memory_space<vmem>>, vector<40x288xf32>
    %cst_17 = arith.constant dense<0.000000e+00> : vector<8x288xf32>
    %32 = tpu.matmul %30, %31, %cst_17 {dimension_numbers = #tpu.dot_dimension_numbers<[1], [0], [0], [1], [0, 0, 1, 1], [], []>} : vector<8x40xf32>, vector<40x288xf32>, vector<8x288xf32> -> vector<8x288xf32>
    %c0_18 = arith.constant 0 : index
    %c0_19 = arith.constant 0 : index
    %33 = vector.load %arg3[%c0_18, %c0_19] : memref<8x1xf32, #tpu.memory_space<vmem>>, vector<8x1xf32>
    %34 = vector.broadcast %33 : vector<8x1xf32> to vector<8x288xf32>
    %35 = arith.addf %32, %34 : vector<8x288xf32>
    %c0_20 = arith.constant 0 : index
    %c0_21 = arith.constant 0 : index
    %c0_22 = arith.constant 0 : index
    %36 = vector.load %arg4[%c0_20, %c0_21, %c0_22] : memref<1x8x288xf32, #tpu.memory_space<vmem>>, vector<1x8x288xf32>
    %37 = vector.shape_cast %36 : vector<1x8x288xf32> to vector<8x288xf32>
    %38 = vector.shape_cast %35 : vector<8x288xf32> to vector<1x8x288xf32>
    tpu.vector_store %arg4[%c0_20, %c0_21, %c0_22], %38 {strides = array<i32>} : memref<1x8x288xf32, #tpu.memory_space<vmem>>, vector<1x8x288xf32>,
    return
  }
  func.func @transform_0(%arg0: i32) -> (i32, i32, i32) {
    %c0_i32 = arith.constant 0 : i32
    %c0_i32_0 = arith.constant 0 : i32
    %c0_i32_1 = arith.constant 0 : i32
    return %arg0, %c0_i32, %c0_i32_0 : i32, i32, i32
  }
  func.func @transform_1(%arg0: i32) -> (i32, i32) {
    %c0_i32 = arith.constant 0 : i32
    %c0_i32_0 = arith.constant 0 : i32
    %c0_i32_1 = arith.constant 0 : i32
    return %c0_i32, %c0_i32_0 : i32, i32
  }
  func.func @transform_2(%arg0: i32) -> (i32, i32) {
    %c0_i32 = arith.constant 0 : i32
    %c0_i32_0 = arith.constant 0 : i32
    %c0_i32_1 = arith.constant 0 : i32
    return %c0_i32, %c0_i32_0 : i32, i32
  }
  func.func @transform_3(%arg0: i32) -> (i32, i32, i32) {
    %c0_i32 = arith.constant 0 : i32
    %c0_i32_0 = arith.constant 0 : i32
    %c0_i32_1 = arith.constant 0 : i32
    return %arg0, %c0_i32, %c0_i32_0 : i32, i32, i32
  }
}

</mosaic_0001>

<llo_original>
// kernel: tpu_custom_call.1
$region0: #{tpu_custom_call.1}
  #allocation0 [shape = 'u32[]', space=smem, size = 0x4, offset = 0x4, fixed_abs, tag = 'smem constant byte address 0x4 - core index']
  #allocation1 [shape = 'u32[144,128]{1,0:T(1,128)}', space=vmem, size = 0x12000, scoped, tag = 'internal scratch']
  #allocation2 [shape = 'f32[40,288]{1,0:T(8,128)}', space=vmem, size = 0xf000, scoped, tag = 'scratch operand']
  %s0 = inlined_call_operand.hbm [shape: f32[2,4,342], index: 0, kind: input, shape index: {}]
  %s1 = inlined_call_operand.vmem [shape: f32[8,40], index: 1, kind: input, shape index: {}]
  %s2 = inlined_call_operand.vmem [shape: f32[8,1], index: 2, kind: input, shape index: {}]
  %s3 = inlined_call_operand.hbm [shape: f32[2,8,288], index: 3, kind: output, shape index: {}]
  %s4 = sld [smem:[#allocation0]]
  $region49: #{tpu_custom_call.1} parent=0
    _
  %s6 = ssub.s32 1, %s4
  %s7 = scalar_select 0, %s6, %s4
  $region1: #{tpu_custom_call.1} parent=0
    #allocation3 [shape = 'u8[12288]{0}', space=vmem, size = 0x3000, scoped, tag = 'input window, operand 0']
    #allocation4 [shape = 's32[2]{0}', space=sflag, size = 0x8, scoped, tag = 'scoped memory for tpu_custom_call.1']
    #allocation5 [shape = 's32[2]{0}', space=sflag, size = 0x8, scoped, tag = 'scoped memory for tpu_custom_call.1']
    #allocation6 [shape = 'u8[24576]{0}', space=vmem, size = 0x6000, scoped, tag = 'output window, operand 0']
    %8 = vsyncpa [#allocation4], 0
    %s9 = scalar_lea.sflag [#allocation4], 1
    %10 = vsyncpa %s9, 0
    %11 = vsyncpa [#allocation5], 0
    %s12 = scalar_lea.sflag [#allocation5], 1
    %13 = vsyncpa %s12, 0
    loop: start=0, step=1, limit=4
    $region2: #{tpu_custom_call.1} parent=1 // loop_pre_header
      _
    $region3: #{tpu_custom_call.1} parent=1 // loop_header
      %s15 = sphi 0, %s19
      %p16 = scmp.ge.s32.totalorder %s15, 4
      %s25 = sphi 0, %s27
      %s28 = sphi 0, %s25
      %s29 = sphi 0, %s28
      %s45 = sphi 0, %s29
      %s49 = sphi 0, %s49
      %s51 = sphi 0, %s49
      %s52 = sphi 0, %s51
      %s66 = sphi 0, %s52
      %s70 = sphi 0, %s70
      %s72 = sphi 0, %s70
      %s73 = sphi 0, %s72
      %s87 = sphi 0, %s73
      %s93 = sphi 0, %s95
      %s96 = sphi 0, %s93
      %s97 = sphi 0, %s96
      %s113 = sphi 0, %s97
    $region4: #{tpu_custom_call.1} parent=1 // loop_header_branch
      %18 = sbr.rel (%p16) target = $region8
    $region5: #{tpu_custom_call.1} parent=1 // loop_body
      %s20 = ssub.s32 %s15, 1
      %s21 = ssub.s32 %s15, 2
      %s22 = sadd.s32 %s15, 1
      %s23 = ssub.s32 %s15, %s22
      %p24 = scmp.eq.s32.totalorder %s23, 0
      %s26 = sadd.s32 %s25, 1
      %s27 = scalar_select %p24, %s25, %s26
      %p30 = pneg %p24
      %p31 = scmp.eq.s32.totalorder %s15, 1
      %p32 = por %p30, %p31
      %p33 = scmp.ne.s32.totalorder %s25, %s28
      %p34 = scmp.eq.s32.totalorder %s15, 0
      %p35 = por %p33, %p34
      %p36 = scmp.ne.s32.totalorder %s25, %s28
      %p37 = scmp.eq.s32.totalorder %s20, 1
      %p38 = por %p36, %p37
      %p39 = scmp.ne.s32.totalorder %s28, %s29
      %p40 = scmp.eq.s32.totalorder %s20, 0
      %p41 = por %p39, %p40
      %p42 = scmp.ne.s32.totalorder %s28, %s29
      %p43 = scmp.eq.s32.totalorder %s21, 1
      %p44 = por %p42, %p43
      %p46 = scmp.ne.s32.totalorder %s29, %s45
      %p47 = scmp.eq.s32.totalorder %s21, 0
      %p48 = por %p46, %p47
      %s50 = sadd.s32 %s49, 1
      %p53 = scmp.eq.s32.totalorder %s15, 1
      %p54 = scmp.ne.s32.totalorder %s49, %s51
      %p55 = scmp.eq.s32.totalorder %s15, 0
      %p56 = por %p54, %p55
      %p57 = scmp.ne.s32.totalorder %s49, %s51
      %p58 = scmp.eq.s32.totalorder %s20, 1
      %p59 = por %p57, %p58
      %p60 = scmp.ne.s32.totalorder %s51, %s52
      %p61 = scmp.eq.s32.totalorder %s20, 0
      %p62 = por %p60, %p61
      %p63 = scmp.ne.s32.totalorder %s51, %s52
      %p64 = scmp.eq.s32.totalorder %s21, 1
      %p65 = por %p63, %p64
      %p67 = scmp.ne.s32.totalorder %s52, %s66
      %p68 = scmp.eq.s32.totalorder %s21, 0
      %p69 = por %p67, %p68
      %s71 = sadd.s32 %s70, 1
      %p74 = scmp.eq.s32.totalorder %s15, 1
      %p75 = scmp.ne.s32.totalorder %s70, %s72
      %p76 = scmp.eq.s32.totalorder %s15, 0
      %p77 = por %p75, %p76
      %p78 = scmp.ne.s32.totalorder %s70, %s72
      %p79 = scmp.eq.s32.totalorder %s20, 1
      %p80 = por %p78, %p79
      %p81 = scmp.ne.s32.totalorder %s72, %s73
      %p82 = scmp.eq.s32.totalorder %s20, 0
      %p83 = por %p81, %p82
      %p84 = scmp.ne.s32.totalorder %s72, %s73
      %p85 = scmp.eq.s32.totalorder %s21, 1
      %p86 = por %p84, %p85
      %p88 = scmp.ne.s32.totalorder %s73, %s87
      %p89 = scmp.eq.s32.totalorder %s21, 0
      %p90 = por %p88, %p89
      %s91 = ssub.s32 %s15, %s22
      %p92 = scmp.eq.s32.totalorder %s91, 0
      %s94 = sadd.s32 %s93, 1
      %s95 = scalar_select %p92, %s93, %s94
      %p98 = pneg %p92
      %p99 = scmp.eq.s32.totalorder %s15, 1
      %p100 = por %p98, %p99
      %p101 = scmp.ne.s32.totalorder %s93, %s96
      %p102 = scmp.eq.s32.totalorder %s15, 0
      %p103 = por %p101, %p102
      %p104 = scmp.ne.s32.totalorder %s93, %s96
      %p105 = scmp.eq.s32.totalorder %s20, 1
      %p106 = por %p104, %p105
      %p107 = scmp.ne.s32.totalorder %s96, %s97
      %p108 = scmp.eq.s32.totalorder %s20, 0
      %p109 = por %p107, %p108
      %p110 = scmp.ne.s32.totalorder %s96, %s97
      %p111 = scmp.eq.s32.totalorder %s21, 1
      %p112 = por %p110, %p111
      %p114 = scmp.ne.s32.totalorder %s97, %s113
      %p115 = scmp.eq.s32.totalorder %s21, 0
      %p116 = por %p114, %p115
      %p117 = scmp.le.s32.totalorder 1, %s15
      %p118 = scmp.lt.s32.totalorder %s15, 3
      %p119 = pnand %p117, %p118
      %p120 = pneg %p119
      // Predicated region
      $region9: #{tpu_custom_call.1} parent=5 // pred_check
        _
      $region10: #{tpu_custom_call.1} parent=5 // pred_check_branch
        %122 = sbr.rel (%p119) target = $region12
      $region11: #{tpu_custom_call.1} parent=5 // pred_region
        %s123 = ssub.s32 %s15, 1
        // Predicated region
        $region13: #{tpu_custom_call.1} parent=11 // pred_check
          %p124 = pneg %p62
        $region14: #{tpu_custom_call.1} parent=11 // pred_check_branch
          %126 = sbr.rel (%p124) target = $region16
        $region15: #{tpu_custom_call.1} parent=11 // pred_region
          _
        $region16: #{tpu_custom_call.1} parent=11 // pred_fallthru
          _
        // Predicated region
        $region17: #{tpu_custom_call.1} parent=11 // pred_check
          %p127 = pneg %p83
        $region18: #{tpu_custom_call.1} parent=11 // pred_check_branch
          %129 = sbr.rel (%p127) target = $region20
        $region19: #{tpu_custom_call.1} parent=11 // pred_region
          _
        $region20: #{tpu_custom_call.1} parent=11 // pred_fallthru
          _
      $region12: #{tpu_custom_call.1} parent=5 // pred_fallthru
        _
      %p130 = scmp.lt.s32.totalorder %s15, 2
      // Predicated region
      $region21: #{tpu_custom_call.1} parent=5 // pred_check
        %p131 = pneg %p130
      $region22: #{tpu_custom_call.1} parent=5 // pred_check_branch
        %133 = sbr.rel (%p131) target = $region24
      $region23: #{tpu_custom_call.1} parent=5 // pred_region
        // Predicated region
        $region25: #{tpu_custom_call.1} parent=23 // pred_check
          %p134 = pneg %p35
        $region26: #{tpu_custom_call.1} parent=23 // pred_check_branch
          %136 = sbr.rel (%p134) target = $region28
        $region27: #{tpu_custom_call.1} parent=23 // pred_region
          %s137 = sand.u32 %s25, 1
          %s138 = scalar_lea.sflag [#allocation4], %s137
          %s139 = sand.u32 %s25, 1
          %s140 = smul.addr %s139, 12
          %s141 = scalar_lea.vmem [#allocation3], %s140
          %s143 = ssub.s32 192, 192
          %144 = vsyncadd %s138, %s143
          %s145 = smul.addr %s15, 3
          %s146 = smul.addr %s145, 64
          %s147 = scalar_lea.hbm %s0, %s146
          %s149 = sshll.u32 %s141, 4
          %s150 = int_to_ptr.vmem [resolvable:$true] %s149
          %152 = dma.hbm_to_vmem [thread:$0]  %s147, 192, %s150, %s138
        $region28: #{tpu_custom_call.1} parent=23 // pred_fallthru
          _
      $region24: #{tpu_custom_call.1} parent=5 // pred_fallthru
        _
      %p153 = scmp.le.s32.totalorder 1, %s15
      %p154 = scmp.lt.s32.totalorder %s15, 3
      %p155 = pnand %p153, %p154
      %p156 = pneg %p155
      // Predicated region
      $region29: #{tpu_custom_call.1} parent=5 // pred_check
        _
      $region30: #{tpu_custom_call.1} parent=5 // pred_check_branch
        %158 = sbr.rel (%p155) target = $region32
      $region31: #{tpu_custom_call.1} parent=5 // pred_region
        %s159 = ssub.s32 %s15, 1
        %s160 = sand.u32 %s28, 1
        %s161 = scalar_lea.sflag [#allocation4], %s160
        %s162 = sand.u32 %s28, 1
        %s163 = smul.addr %s162, 12
        %s164 = scalar_lea.vmem [#allocation3], %s163
        // Predicated region
        $region33: #{tpu_custom_call.1} parent=31 // pred_check
          %p165 = pneg %p41
        $region34: #{tpu_custom_call.1} parent=31 // pred_check_branch
          %167 = sbr.rel (%p165) target = $region36
        $region35: #{tpu_custom_call.1} parent=31 // pred_region
          %168 = dma.done %s161, 192
        $region36: #{tpu_custom_call.1} parent=31 // pred_fallthru
          _
        %s169 = sand.u32 %s28, 1
        %s170 = scalar_lea.sflag [#allocation4], %s169
        %s171 = sand.u32 %s28, 1
        %s172 = smul.addr %s171, 12
        %s173 = scalar_lea.vmem [#allocation3], %s172
        %p174 = pneg %p41
        %p175 = pneg %p38
        %p176 = pneg %p62
        %p177 = pneg %p59
        %p178 = pneg %p83
        %p179 = pneg %p80
        %p180 = pneg %p109
        %p181 = pneg %p106
        %s182 = sand.u32 %s96, 1
        %s183 = scalar_lea.sflag [#allocation5], %s182
        %s184 = sand.u32 %s96, 1
        %s185 = smul.addr %s184, 24
        %s186 = scalar_lea.vmem [#allocation6], %s185
        %v187 = vld [vmem:[%s164] sm:$0xff]
        %v188 = vld [vmem:[%s164 + $0x8] sm:$0xf]
        %v191 = vcombine.high %v187, %v187
        %193 = vst [vmem:[#allocation2] sm:$0xf] %v187
        %194 = vst [vmem:[#allocation2 + $0x8] sm:$0xf] %v191
        %vm195 = vcmask 257024
        %196 = vst.msk [vmem:[#allocation2 + $0x10] sm:$0xf] %vm195, %v188
        %v197 = vcombine.low %v187, %v187
        %v198 = vcombine.low %v188, %v188
        %199 = vrot.lane.b32.xlu0 %v197, 127
        %v200 = vpop.permute.xlu0 %199
        %201 = vrot.lane.b32.xlu0 %v187, 127
        %v202 = vpop.permute.xlu0 %201
        %203 = vrot.lane.b32.xlu0 %v198, 127
        %v204 = vpop.permute.xlu0 %203
        %vm205 = vcmask 1039360
        %v206 = vsel %vm205, %v200, %v202
        %v207 = vsel %vm205, %v202, %v204
        %211 = vst [vmem:[#allocation2] sm:$0xf0] %v206
        %212 = vst [vmem:[#allocation2 + $0x8] sm:$0xf0] %v207
        %vm213 = vcmask 261124
        %214 = vst.msk [vmem:[#allocation2 + $0x10] sm:$0xf0] %vm213, %v204
        %215 = vrot.lane.b32.xlu0 %v187, 126
        %v216 = vpop.permute.xlu0 %215
        %217 = vrot.lane.b32.xlu0 %v191, 126
        %v218 = vpop.permute.xlu0 %217
        %219 = vrot.lane.b32.xlu0 %v188, 126
        %v220 = vpop.permute.xlu0 %219
        %vm221 = vcmask 1031168
        %v222 = vsel %vm221, %v216, %v218
        %v223 = vsel %vm221, %v218, %v220
        %227 = vst [vmem:[#allocation2 + $0x18] sm:$0xf] %v222
        %228 = vst [vmem:[#allocation2 + $0x20] sm:$0xf] %v223
        %229 = vst.msk [vmem:[#allocation2 + $0x28] sm:$0xf] %vm195, %v220
        %230 = vrot.lane.b32.xlu0 %v197, 110
        %v231 = vpop.permute.xlu0 %230
        %232 = vrot.lane.b32.xlu0 %v187, 110
        %v233 = vpop.permute.xlu0 %232
        %234 = vrot.lane.b32.xlu0 %v198, 110
        %v235 = vpop.permute.xlu0 %234
        %vm236 = vcmask 900096
        %v237 = vsel %vm236, %v231, %v233
        %v238 = vsel %vm236, %v233, %v235
        %242 = vst [vmem:[#allocation2 + $0x18] sm:$0xf0] %v237
        %243 = vst [vmem:[#allocation2 + $0x20] sm:$0xf0] %v238
        %244 = vst.msk [vmem:[#allocation2 + $0x28] sm:$0xf0] %vm213, %v235
        %245 = vrot.lane.b32.xlu0 %v187, 109
        %v246 = vpop.permute.xlu0 %245
        %247 = vrot.lane.b32.xlu0 %v191, 109
        %v248 = vpop.permute.xlu0 %247
        %249 = vrot.lane.b32.xlu0 %v188, 109
        %v250 = vpop.permute.xlu0 %249
        %vm251 = vcmask 891904
        %v252 = vsel %vm251, %v246, %v248
        %v253 = vsel %vm251, %v248, %v250
        %257 = vst [vmem:[#allocation2 + $0x30] sm:$0xf] %v252
        %258 = vst [vmem:[#allocation2 + $0x38] sm:$0xf] %v253
        %259 = vst.msk [vmem:[#allocation2 + $0x40] sm:$0xf] %vm195, %v250
        %260 = vrot.lane.b32.xlu0 %v197, 108
        %v261 = vpop.permute.xlu0 %260
        %262 = vrot.lane.b32.xlu0 %v187, 108
        %v263 = vpop.permute.xlu0 %262
        %264 = vrot.lane.b32.xlu0 %v198, 108
        %v265 = vpop.permute.xlu0 %264
        %vm266 = vcmask 883712
        %v267 = vsel %vm266, %v261, %v263
        %v268 = vsel %vm266, %v263, %v265
        %272 = vst [vmem:[#allocation2 + $0x30] sm:$0xf0] %v267
        %273 = vst [vmem:[#allocation2 + $0x38] sm:$0xf0] %v268
        %274 = vst.msk [vmem:[#allocation2 + $0x40] sm:$0xf0] %vm213, %v265
        %275 = vrot.lane.b32.xlu0 %v187, 92
        %v276 = vpop.permute.xlu0 %275
        %277 = vrot.lane.b32.xlu0 %v191, 92
        %v278 = vpop.permute.xlu0 %277
        %279 = vrot.lane.b32.xlu0 %v188, 92
        %v280 = vpop.permute.xlu0 %279
        %vm281 = vcmask 752640
        %v282 = vsel %vm281, %v276, %v278
        %v283 = vsel %vm281, %v278, %v280
        %287 = vst [vmem:[#allocation2 + $0x48] sm:$0xf] %v282
        %288 = vst [vmem:[#allocation2 + $0x50] sm:$0xf] %v283
        %289 = vst.msk [vmem:[#allocation2 + $0x58] sm:$0xf] %vm195, %v280
        %290 = vrot.lane.b32.xlu0 %v197, 91
        %v291 = vpop.permute.xlu0 %290
        %292 = vrot.lane.b32.xlu0 %v187, 91
        %v293 = vpop.permute.xlu0 %292
        %294 = vrot.lane.b32.xlu0 %v198, 91
        %v295 = vpop.permute.xlu0 %294
        %vm296 = vcmask 744448
        %v297 = vsel %vm296, %v291, %v293
        %v298 = vsel %vm296, %v293, %v295
        %302 = vst [vmem:[#allocation2 + $0x48] sm:$0xf0] %v297
        %303 = vst [vmem:[#allocation2 + $0x50] sm:$0xf0] %v298
        %304 = vst.msk [vmem:[#allocation2 + $0x58] sm:$0xf0] %vm213, %v295
        %305 = vrot.lane.b32.xlu0 %v187, 90
        %v306 = vpop.permute.xlu0 %305
        %307 = vrot.lane.b32.xlu0 %v191, 90
        %v308 = vpop.permute.xlu0 %307
        %309 = vrot.lane.b32.xlu0 %v188, 90
        %v310 = vpop.permute.xlu0 %309
        %vm311 = vcmask 736256
        %v312 = vsel %vm311, %v306, %v308
        %v313 = vsel %vm311, %v308, %v310
        %317 = vst [vmem:[#allocation2 + $0x60] sm:$0xf] %v312
        %318 = vst [vmem:[#allocation2 + $0x68] sm:$0xf] %v313
        %319 = vst.msk [vmem:[#allocation2 + $0x70] sm:$0xf] %vm195, %v310
        %320 = vst [vmem:[#allocation2 + $0x60] sm:$0xf0] 0.0
        %321 = vst [vmem:[#allocation2 + $0x68] sm:$0xf0] 0.0
        %322 = vst.msk [vmem:[#allocation2 + $0x70] sm:$0xf0] %vm213, 0.0
        %v323 = vld [vmem:[%s1] sm:$0xff]
        %v324 = vld [vmem:[#allocation2] sm:$0xff]
        %v325 = vld [vmem:[#allocation2 + $0x8] sm:$0xff]
        %v326 = vld [vmem:[#allocation2 + $0x10] sm:$0xff]
        %v327 = vld [vmem:[#allocation2 + $0x18] sm:$0xff]
        %v328 = vld [vmem:[#allocation2 + $0x20] sm:$0xff]
        %v329 = vld [vmem:[#allocation2 + $0x28] sm:$0xff]
        %v330 = vld [vmem:[#allocation2 + $0x30] sm:$0xff]
        %v331 = vld [vmem:[#allocation2 + $0x38] sm:$0xff]
        %v332 = vld [vmem:[#allocation2 + $0x40] sm:$0xff]
        %v333 = vld [vmem:[#allocation2 + $0x48] sm:$0xff]
        %v334 = vld [vmem:[#allocation2 + $0x50] sm:$0xff]
        %v335 = vld [vmem:[#allocation2 + $0x58] sm:$0xff]
        %v336 = vld [vmem:[#allocation2 + $0x60] sm:$0xff]
        %v337 = vld [vmem:[#allocation2 + $0x68] sm:$0xff]
        %v338 = vld [vmem:[#allocation2 + $0x70] sm:$0xff]
        %v339 = vld [vmem:[%s2] sm:$0xff]
        %341 = vset.pattern.permute.xlu0 0
        %342 = vperm.xlu0 %341, %v339
        %v343 = vpop.permute.xlu0 %342
        %vm345 = vcmask 326656
        %v347 = vsel %vm345, %v323, 0
        %349 = vmatprep.subr.mxu0 0.0
        %350 = vmatpush1.msra.mxu0 0.0
        %351 = vmatprep.subr.mxu0 0.0
        %352 = vmatpush1.msra.mxu0 0.0
        %353 = vmatprep.subr.mxu0 0.0
        %354 = vmatpush1.msra.mxu0 0.0
        %355 = vmatprep.subr.mxu0 0.0
        %356 = vmatpush1.msra.mxu0 0.0
        %357 = vmatprep.subr.mxu0 0.0
        %358 = vmatpush1.msra.mxu0 0.0
        %359 = vmatprep.subr.mxu0 0.0
        %360 = vmatpush1.msra.mxu0 0.0
        %361 = vmatprep.subr.mxu0 0.0
        %362 = vmatpush1.msra.mxu0 0.0
        %363 = vmatprep.subr.mxu0 0.0
        %364 = vmatpush1.msra.mxu0 0.0
        %365 = vmatprep.subr.mxu0 0.0
        %366 = vmatpush1.msra.mxu0 0.0
        %367 = vmatprep.subr.mxu0 0.0
        %368 = vmatpush1.msra.mxu0 0.0
        %369 = vmatprep.subr.mxu0 0.0
        %370 = vmatpush1.msra.mxu0 0.0
        %371 = vmatprep.subr.mxu0 %v337
        %372 = vmatpush1.msra.mxu0 %v336
        %373 = vmatprep.subr.mxu0 %v334
        %374 = vmatpush1.msra.mxu0 %v333
        %375 = vmatprep.subr.mxu0 %v331
        %376 = vmatpush1.msra.mxu0 %v330
        %377 = vmatprep.subr.mxu0 %v328
        %378 = vmatpush1.msra.mxu0 %v327
        %379 = vmatprep.subr.mxu0 %v325
        %380 = vmatpush1.msra.mxu0 %v324
        %381 = vmatprep.subr.mxu0 0.0
        %382 = vmatpush2.msra.mxu0 0.0
        %383 = vmatprep.subr.mxu0 0.0
        %384 = vmatpush2.msra.mxu0 0.0
        %385 = vmatprep.subr.mxu0 0.0
        %386 = vmatpush2.msra.mxu0 0.0
        %387 = vmatprep.subr.mxu0 0.0
        %388 = vmatpush2.msra.mxu0 0.0
        %389 = vmatprep.subr.mxu0 0.0
        %390 = vmatpush2.msra.mxu0 0.0
        %391 = vmatprep.subr.mxu0 0.0
        %392 = vmatpush2.msra.mxu0 0.0
        %393 = vmatprep.subr.mxu0 0.0
        %394 = vmatpush2.msra.mxu0 0.0
        %395 = vmatprep.subr.mxu0 0.0
        %396 = vmatpush2.msra.mxu0 0.0
        %397 = vmatprep.subr.mxu0 0.0
        %398 = vmatpush2.msra.mxu0 0.0
        %399 = vmatprep.subr.mxu0 0.0
        %400 = vmatpush2.msra.mxu0 0.0
        %401 = vmatprep.subr.mxu0 0.0
        %402 = vmatpush2.msra.mxu0 0.0
        %403 = vmatprep.subr.mxu0 0.0
        %404 = vmatpush2.msra.mxu0 0.0
        %405 = vmatprep.subr.mxu0 0.0
        %406 = vmatpush2.msra.mxu0 0.0
        %407 = vmatprep.subr.mxu0 0.0
        %408 = vmatpush2.msra.mxu0 0.0
        %409 = vmatprep.subr.mxu0 0.0
        %410 = vmatpush2.msra.mxu0 0.0
        %411 = vmatprep.subr.mxu0 0.0
        %412 = vmatpush2.msra.mxu0 0.0
        %413 = vmatprep.mubr.f32.mxu0 0.0
        %414 = vmatmul.mubr.f32.gmra.mxu0 %v347
        %v415 = vpop.f32.mrf.mxu0
        %v416 = vadd.f32 %v343, %v415
        %v417 = vpop.f32.mrf.mxu0
        %v418 = vadd.f32 %v343, %v417
        %419 = vdwg.mxu0
        %420 = vmatprep.subr.mxu0 0.0
        %421 = vmatpush1.msra.mxu0 0.0
        %422 = vmatprep.subr.mxu0 0.0
        %423 = vmatpush1.msra.mxu0 0.0
        %424 = vmatprep.subr.mxu0 0.0
        %425 = vmatpush1.msra.mxu0 0.0
        %426 = vmatprep.subr.mxu0 0.0
        %427 = vmatpush1.msra.mxu0 0.0
        %428 = vmatprep.subr.mxu0 0.0
        %429 = vmatpush1.msra.mxu0 0.0
        %430 = vmatprep.subr.mxu0 0.0
        %431 = vmatpush1.msra.mxu0 0.0
        %432 = vmatprep.subr.mxu0 0.0
        %433 = vmatpush1.msra.mxu0 0.0
        %434 = vmatprep.subr.mxu0 0.0
        %435 = vmatpush1.msra.mxu0 0.0
        %436 = vmatprep.subr.mxu0 0.0
        %437 = vmatpush1.msra.mxu0 0.0
        %438 = vmatprep.subr.mxu0 0.0
        %439 = vmatpush1.msra.mxu0 0.0
        %440 = vmatprep.subr.mxu0 0.0
        %441 = vmatpush1.msra.mxu0 0.0
        %442 = vmatprep.subr.mxu0 0.0
        %443 = vmatpush1.msra.mxu0 %v338
        %444 = vmatprep.subr.mxu0 0.0
        %445 = vmatpush1.msra.mxu0 %v335
        %446 = vmatprep.subr.mxu0 0.0
        %447 = vmatpush1.msra.mxu0 %v332
        %448 = vmatprep.subr.mxu0 0.0
        %449 = vmatpush1.msra.mxu0 %v329
        %450 = vmatprep.subr.mxu0 0.0
        %451 = vmatpush1.msra.mxu0 %v326
        %452 = vmatprep.subr.mxu0 0.0
        %453 = vmatpush2.msra.mxu0 0.0
        %454 = vmatprep.subr.mxu0 0.0
        %455 = vmatpush2.msra.mxu0 0.0
        %456 = vmatprep.subr.mxu0 0.0
        %457 = vmatpush2.msra.mxu0 0.0
        %458 = vmatprep.subr.mxu0 0.0
        %459 = vmatpush2.msra.mxu0 0.0
        %460 = vmatprep.subr.mxu0 0.0
        %461 = vmatpush2.msra.mxu0 0.0
        %462 = vmatprep.subr.mxu0 0.0
        %463 = vmatpush2.msra.mxu0 0.0
        %464 = vmatprep.subr.mxu0 0.0
        %465 = vmatpush2.msra.mxu0 0.0
        %466 = vmatprep.subr.mxu0 0.0
        %467 = vmatpush2.msra.mxu0 0.0
        %468 = vmatprep.subr.mxu0 0.0
        %469 = vmatpush2.msra.mxu0 0.0
        %470 = vmatprep.subr.mxu0 0.0
        %471 = vmatpush2.msra.mxu0 0.0
        %472 = vmatprep.subr.mxu0 0.0
        %473 = vmatpush2.msra.mxu0 0.0
        %474 = vmatprep.subr.mxu0 0.0
        %475 = vmatpush2.msra.mxu0 0.0
        %476 = vmatprep.subr.mxu0 0.0
        %477 = vmatpush2.msra.mxu0 0.0
        %478 = vmatprep.subr.mxu0 0.0
        %479 = vmatpush2.msra.mxu0 0.0
        %480 = vmatprep.subr.mxu0 0.0
        %481 = vmatpush2.msra.mxu0 0.0
        %482 = vmatprep.subr.mxu0 0.0
        %483 = vmatpush2.msra.mxu0 0.0
        %484 = vmatprep.mubr.f32.mxu0 0.0
        %485 = vmatmul.mubr.f32.gmra.mxu0 %v347
        %v486 = vpop.f32.mrf.mxu0
        %v487 = vadd.f32 %v343, %v486
        %v488 = vpop.f32.mrf.mxu0
        %489 = vdwg.mxu0
        %490 = vst [vmem:[%s186] sm:$0xff] %v416
        %491 = vst [vmem:[%s186 + $0x8] sm:$0xff] %v418
        %vm492 = vcmask 261120
        %493 = vst.msk [vmem:[%s186 + $0x10] sm:$0xff] %vm492, %v487
        %s494 = sand.u32 %s96, 1
        %s495 = scalar_lea.sflag [#allocation5], %s494
        %s496 = sand.u32 %s96, 1
        %s497 = smul.addr %s496, 24
        %s498 = scalar_lea.vmem [#allocation6], %s497
        // Predicated region
        $region37: #{tpu_custom_call.1} parent=31 // pred_check
          %p499 = pneg %p106
        $region38: #{tpu_custom_call.1} parent=31 // pred_check_branch
          %501 = sbr.rel (%p499) target = $region40
        $region39: #{tpu_custom_call.1} parent=31 // pred_region
          %s503 = ssub.s32 384, 384
          %504 = vsyncadd %s495, %s503
          %s505 = smul.addr %s20, 3
          %s506 = smul.addr %s505, 128
          %s507 = scalar_lea.hbm %s3, %s506
          %s509 = sshll.u32 %s498, 4
          %s510 = int_to_ptr.vmem [resolvable:$true] %s509
          %512 = dma.vmem_to_hbm [thread:$0]  %s510, 384, %s507, %s495
        $region40: #{tpu_custom_call.1} parent=31 // pred_fallthru
          _
      $region32: #{tpu_custom_call.1} parent=5 // pred_fallthru
        _
      %p513 = scmp.le.s32.totalorder 2, %s15
      // Predicated region
      $region41: #{tpu_custom_call.1} parent=5 // pred_check
        %p514 = pneg %p513
      $region42: #{tpu_custom_call.1} parent=5 // pred_check_branch
        %516 = sbr.rel (%p514) target = $region44
      $region43: #{tpu_custom_call.1} parent=5 // pred_region
        %s517 = ssub.s32 %s15, 2
        // Predicated region
        $region45: #{tpu_custom_call.1} parent=43 // pred_check
          %p518 = pneg %p112
        $region46: #{tpu_custom_call.1} parent=43 // pred_check_branch
          %520 = sbr.rel (%p518) target = $region48
        $region47: #{tpu_custom_call.1} parent=43 // pred_region
          %s521 = sand.u32 %s97, 1
          %s522 = scalar_lea.sflag [#allocation5], %s521
          %s523 = sand.u32 %s97, 1
          %s524 = smul.addr %s523, 24
          %s525 = scalar_lea.vmem [#allocation6], %s524
          %526 = dma.done %s522, 384
        $region48: #{tpu_custom_call.1} parent=43 // pred_fallthru
          _
      $region44: #{tpu_custom_call.1} parent=5 // pred_fallthru
        _
    $region6: #{tpu_custom_call.1} parent=1 // loop_footer
      %s19 = sadd.s32 1, %s15
    $region7: #{tpu_custom_call.1} parent=1 // loop_footer_branch
      %14 = sbr.rel target = $region3
    $region8: #{tpu_custom_call.1} parent=1 // loop_exit
      _
    %527 = vsyncpa [#allocation4], 1
    %s528 = scalar_lea.sflag [#allocation4], 1
    %529 = vsyncpa %s528, 1
    %530 = vsyncpa [#allocation5], 1
    %s531 = scalar_lea.sflag [#allocation5], 1
    %532 = vsyncpa %s531, 1

</llo_original>
